<compile_context>
chip_gen: v6e
topology: v6e:2x2x1
jax: 0.10.0
libtpu: 0.0.40
codegen_flags: <defaults>
</compile_context>

<pallas_src>
import math

import jax
import jax.numpy as jnp
from jax.experimental import pallas as pl
from jax.experimental.pallas import tpu as pltpu

TM_MAX = 512  # batch-tile width (lanes) for the gridded large-batch path; sweep 256-1024


def _round_up(x, m):
    return ((x + m - 1) // m) * m


def _actor_kernel(x_ref, w1_ref, b1_ref, w2_ref, b2_ref, wh_ref, bh_ref, out_ref):
    # Feature-major layout: batch is the lane axis everywhere -> plain [M,K]@[K,N] matmuls,
    # lane-dense output store, zero in-kernel transposes.
    x = x_ref[...]                                                      # [D, TM] bf16
    h1 = jnp.tanh(
        jnp.dot(w1_ref[...], x, preferred_element_type=jnp.float32) + b1_ref[...]
    )                                                                   # [fc1, TM] f32
    h2 = jnp.tanh(
        jnp.dot(w2_ref[...], h1.astype(jnp.bfloat16),
                preferred_element_type=jnp.float32) + b2_ref[...]
    )                                                                   # [fc2, TM] f32
    head = (
        jnp.dot(wh_ref[...], h2.astype(jnp.bfloat16),
                preferred_element_type=jnp.float32) + bh_ref[...]
    )                                                                   # [HP, TM] f32
    # relu(.) + 1.0 epilogue fused on the accumulator; single lane-dense store.
    out_ref[...] = jnp.maximum(head, 0.0) + 1.0


def continuous_actor_forward(state, params):
    """Returns (alpha, beta) Beta-distribution concentration params, each of shape [B, n_actions]."""
    w1_t, b1_t = params["w1_t"], params["b1_t"]
    w2_t, b2_t = params["w2_t"], params["b2_t"]
    wh_t, bh_t = params["wh_t"], params["bh_t"]
    n_actions = params["n_actions"]
    head_pad = wh_t.shape[0]
    assert 2 * n_actions <= head_pad  # guard against a corrupted fused head

    B, D = state.shape
    fc1 = w1_t.shape[0]
    fc2 = w2_t.shape[0]

    # Batch padding / tiling: one block for small batches, 1-D grid of TM_MAX-wide tiles
    # (double-buffered, sharded across TCs) for large PPO-update batches.
    b8 = _round_up(B, 8)
    if b8 <= TM_MAX:
        tm, bp = b8, b8
    else:
        tm, bp = TM_MAX, _round_up(B, TM_MAX)
    grid = (bp // tm,)

    # Pad + bf16-cast + transpose fused on the wrapper side (the pad materializes a copy anyway).
    state_t = jnp.zeros((D, bp), jnp.bfloat16).at[:, :B].set(state.astype(jnp.bfloat16).T)

    flops = 2 * bp * (D * fc1 + fc1 * fc2 + fc2 * head_pad)
    transcendentals = bp * (fc1 + fc2)  # two tanh layers
    bytes_accessed = (
        state_t.size * state_t.dtype.itemsize
        + w1_t.size * w1_t.dtype.itemsize + b1_t.size * b1_t.dtype.itemsize
        + w2_t.size * w2_t.dtype.itemsize + b2_t.size * b2_t.dtype.itemsize
        + wh_t.size * wh_t.dtype.itemsize + bh_t.size * bh_t.dtype.itemsize
        + bp * head_pad * 4
    )

    def _resident(shape):
        # Full-array block with constant index_map -> stays pinned in VMEM across tiles.
        return pl.BlockSpec(shape, lambda i: (0, 0))

    out = pl.pallas_call(
        _actor_kernel,
        out_shape=jax.ShapeDtypeStruct((head_pad, bp), jnp.float32),
        grid=grid,
        in_specs=[
            pl.BlockSpec((D, tm), lambda i: (0, i)),          # activations: tiled over batch lanes
            _resident(w1_t.shape), _resident(b1_t.shape),
            _resident(w2_t.shape), _resident(b2_t.shape),
            _resident(wh_t.shape), _resident(bh_t.shape),
        ],
        out_specs=pl.BlockSpec((head_pad, tm), lambda i: (0, i)),
        compiler_params=pltpu.CompilerParams(dimension_semantics=("parallel",)),
        cost_estimate=pl.CostEstimate(
            flops=flops,
            transcendentals=transcendentals,
            bytes_accessed=bytes_accessed,
        ),
    )(state_t, w1_t, b1_t, w2_t, b2_t, wh_t, bh_t)

    ab = out[:2 * n_actions, :B].T          # [B, 2*n_actions] f32
    alpha = ab[:, :n_actions]
    beta = ab[:, n_actions:]
    # TODO(synk): for the per-step rollout path (B ~ num_envs) wall time is launch-bound; batch
    # multiple agents/timesteps per call or fuse actor+critic into one kernel at the call site.
    return alpha, beta


def _init_linear(key, fan_in, fan_out):
    """PyTorch nn.Linear-style init U(-1/sqrt(fan_in), 1/sqrt(fan_in))."""
    kw, kb = jax.random.split(key)
    bound = 1.0 / math.sqrt(fan_in)
    w = jax.random.uniform(kw, (fan_in, fan_out), jnp.float32, -bound, bound)
    b = jax.random.uniform(kb, (fan_out,), jnp.float32, -bound, bound)
    return w, b


def make_params(key, input_dims, n_actions, fc1=128, fc2=128):
    k1, k2, ka, kb = jax.random.split(key, 4)
    w1, b1 = _init_linear(k1, input_dims, fc1)
    w2, b2 = _init_linear(k2, fc1, fc2)
    wa, ba = _init_linear(ka, fc2, n_actions)
    wb, bb = _init_linear(kb, fc2, n_actions)

    # Fused (alpha | beta) head, transposed (rows = output features), padded to 8 sublanes.
    head_pad = _round_up(2 * n_actions, 8)
    assert head_pad >= 2 * n_actions
    wh_t = jnp.zeros((head_pad, fc2), jnp.float32)
    wh_t = wh_t.at[:n_actions].set(wa.T).at[n_actions:2 * n_actions].set(wb.T)
    bh_t = jnp.zeros((head_pad, 1), jnp.float32)
    bh_t = bh_t.at[:n_actions, 0].set(ba).at[n_actions:2 * n_actions, 0].set(bb)

    return {
        # weights stored transposed + bf16 (MXU inputs); biases as f32 column vectors
        "w1_t": w1.T.astype(jnp.bfloat16), "b1_t": b1.reshape(fc1, 1),
        "w2_t": w2.T.astype(jnp.bfloat16), "b2_t": b2.reshape(fc2, 1),
        "wh_t": wh_t.astype(jnp.bfloat16), "bh_t": bh_t,
        "n_actions": n_actions,
        # f32 originals for the reference check (reference mirrors kernel dtypes: bf16 matmul
        # inputs, f32 accumulation — i.e. self-consistency check vs the bf16-weight forward).
        "_ref": (w1, b1, w2, b2, wa, ba, wb, bb),
    }


if __name__ == "__main__":
    batch = 4
    input_dims = 16
    fc1 = 128
    fc2 = 128
    n_actions = 4

    root = jax.random.PRNGKey(0)
    k_x, k_p = jax.random.split(root)

    state = jax.random.normal(k_x, (batch, input_dims), jnp.float32)
    params = make_params(k_p, input_dims, n_actions, fc1, fc2)

    fwd = jax.jit(lambda s: continuous_actor_forward(s, params))
    alpha, beta = fwd(state)
    jax.block_until_ready((alpha, beta))

    # Plain-JAX reference mirroring the kernel's dtypes (bf16 weights/activations, f32 acc).
    w1, b1, w2, b2, wa, ba, wb, bb = params["_ref"]
    xb = state.astype(jnp.bfloat16)
    h1 = jnp.tanh(jnp.dot(xb, w1.astype(jnp.bfloat16),
                          preferred_element_type=jnp.float32) + b1)
    h2 = jnp.tanh(jnp.dot(h1.astype(jnp.bfloat16), w2.astype(jnp.bfloat16),
                          preferred_element_type=jnp.float32) + b2)
    a_ref = jnp.maximum(jnp.dot(h2.astype(jnp.bfloat16), wa.astype(jnp.bfloat16),
                                preferred_element_type=jnp.float32) + ba, 0.0) + 1.0
    b_ref = jnp.maximum(jnp.dot(h2.astype(jnp.bfloat16), wb.astype(jnp.bfloat16),
                                preferred_element_type=jnp.float32) + bb, 0.0) + 1.0

    assert alpha.shape == (batch, n_actions) and beta.shape == (batch, n_actions)
    assert jnp.allclose(alpha, a_ref, atol=2e-2, rtol=2e-2)
    assert jnp.allclose(beta, b_ref, atol=2e-2, rtol=2e-2)
    # Beta-distribution concentrations are guaranteed >= 1.0 by relu(.) + 1.
    assert bool(jnp.all(alpha >= 1.0)) and bool(jnp.all(beta >= 1.0))
    # TODO(synk): the Beta(alpha, beta) distribution object itself (sampling/log_prob) is
    # consumed downstream in JAX, not inside the kernel.

    print("KERNEL_OK")
</pallas_src>

<mosaic_0001>
module attributes {stable_mosaic.version = 11 : i64} {
  func.func @_actor_kernel(%arg0: i32, %arg1: memref<16x8xbf16, #tpu.memory_space<vmem>>, %arg2: memref<128x16xbf16, #tpu.memory_space<vmem>>, %arg3: memref<128x1xf32, #tpu.memory_space<vmem>>, %arg4: memref<128x128xbf16, #tpu.memory_space<vmem>>, %arg5: memref<128x1xf32, #tpu.memory_space<vmem>>, %arg6: memref<8x128xbf16, #tpu.memory_space<vmem>>, %arg7: memref<8x1xf32, #tpu.memory_space<vmem>>, %arg8: memref<8x8xf32, #tpu.memory_space<vmem>>) attributes {dimension_semantics = [#tpu.dimension_semantics<parallel>], iteration_bounds = array<i64: 1>, scalar_prefetch = 0 : i64, scratch_operands = 0 : i64, tpu.core_type = #tpu.core_type<tc>, window_params = [{transform_indices = @transform_0, window_bounds = array<i64: 16, 8>}, {pipeline_mode = #tpu.pipeline_mode<synchronous>, transform_indices = @transform_1, window_bounds = array<i64: 128, 16>}, {pipeline_mode = #tpu.pipeline_mode<synchronous>, transform_indices = @transform_2, window_bounds = array<i64: 128, 1>}, {pipeline_mode = #tpu.pipeline_mode<synchronous>, transform_indices = @transform_3, window_bounds = array<i64: 128, 128>}, {pipeline_mode = #tpu.pipeline_mode<synchronous>, transform_indices = @transform_4, window_bounds = array<i64: 128, 1>}, {pipeline_mode = #tpu.pipeline_mode<synchronous>, transform_indices = @transform_5, window_bounds = array<i64: 8, 128>}, {pipeline_mode = #tpu.pipeline_mode<synchronous>, transform_indices = @transform_6, window_bounds = array<i64: 8, 1>}, {transform_indices = @transform_7, window_bounds = array<i64: 8, 8>}]} {
    %c0 = arith.constant 0 : index
    %c0_0 = arith.constant 0 : index
    %0 = vector.load %arg1[%c0, %c0_0] : memref<16x8xbf16, #tpu.memory_space<vmem>>, vector<16x8xbf16>
    %c0_1 = arith.constant 0 : index
    %c0_2 = arith.constant 0 : index
    %1 = vector.load %arg2[%c0_1, %c0_2] : memref<128x16xbf16, #tpu.memory_space<vmem>>, vector<128x16xbf16>
    %cst = arith.constant dense<0.000000e+00> : vector<128x8xf32>
    %2 = tpu.matmul %1, %0, %cst {dimension_numbers = #tpu.dot_dimension_numbers<[1], [0], [0], [1], [0, 0, 1, 1], [], []>} : vector<128x16xbf16>, vector<16x8xbf16>, vector<128x8xf32> -> vector<128x8xf32>
    %c0_3 = arith.constant 0 : index
    %c0_4 = arith.constant 0 : index
    %3 = vector.load %arg3[%c0_3, %c0_4] : memref<128x1xf32, #tpu.memory_space<vmem>>, vector<128x1xf32>
    %4 = vector.broadcast %3 : vector<128x1xf32> to vector<128x8xf32>
    %5 = arith.addf %2, %4 : vector<128x8xf32>
    %6 = math.tanh %5 : vector<128x8xf32>
    %c0_5 = arith.constant 0 : index
    %c0_6 = arith.constant 0 : index
    %7 = vector.load %arg4[%c0_5, %c0_6] : memref<128x128xbf16, #tpu.memory_space<vmem>>, vector<128x128xbf16>
    %8 = arith.truncf %6 : vector<128x8xf32> to vector<128x8xbf16>
    %cst_7 = arith.constant dense<0.000000e+00> : vector<128x8xf32>
    %9 = tpu.matmul %7, %8, %cst_7 {dimension_numbers = #tpu.dot_dimension_numbers<[1], [0], [0], [1], [0, 0, 1, 1], [], []>} : vector<128x128xbf16>, vector<128x8xbf16>, vector<128x8xf32> -> vector<128x8xf32>
    %c0_8 = arith.constant 0 : index
    %c0_9 = arith.constant 0 : index
    %10 = vector.load %arg5[%c0_8, %c0_9] : memref<128x1xf32, #tpu.memory_space<vmem>>, vector<128x1xf32>
    %11 = vector.broadcast %10 : vector<128x1xf32> to vector<128x8xf32>
    %12 = arith.addf %9, %11 : vector<128x8xf32>
    %13 = math.tanh %12 : vector<128x8xf32>
    %c0_10 = arith.constant 0 : index
    %c0_11 = arith.constant 0 : index
    %14 = vector.load %arg6[%c0_10, %c0_11] : memref<8x128xbf16, #tpu.memory_space<vmem>>, vector<8x128xbf16>
    %15 = arith.truncf %13 : vector<128x8xf32> to vector<128x8xbf16>
    %cst_12 = arith.constant dense<0.000000e+00> : vector<8x8xf32>
    %16 = tpu.matmul %14, %15, %cst_12 {dimension_numbers = #tpu.dot_dimension_numbers<[1], [0], [0], [1], [0, 0, 1, 1], [], []>} : vector<8x128xbf16>, vector<128x8xbf16>, vector<8x8xf32> -> vector<8x8xf32>
    %c0_13 = arith.constant 0 : index
    %c0_14 = arith.constant 0 : index
    %17 = vector.load %arg7[%c0_13, %c0_14] : memref<8x1xf32, #tpu.memory_space<vmem>>, vector<8x1xf32>
    %18 = vector.broadcast %17 : vector<8x1xf32> to vector<8x8xf32>
    %19 = arith.addf %16, %18 : vector<8x8xf32>
    %cst_15 = arith.constant 0.000000e+00 : f32
    %20 = vector.broadcast %cst_15 : f32 to vector<8x8xf32>
    %21 = arith.maximumf %19, %20 : vector<8x8xf32>
    %cst_16 = arith.constant 1.000000e+00 : f32
    %22 = vector.broadcast %cst_16 : f32 to vector<8x8xf32>
    %23 = arith.addf %21, %22 : vector<8x8xf32>
    %c0_17 = arith.constant 0 : index
    %c0_18 = arith.constant 0 : index
    %24 = vector.load %arg8[%c0_17, %c0_18] : memref<8x8xf32, #tpu.memory_space<vmem>>, vector<8x8xf32>
    tpu.vector_store %arg8[%c0_17, %c0_18], %23 {strides = array<i32>} : memref<8x8xf32, #tpu.memory_space<vmem>>, vector<8x8xf32>,
    return
  }
  func.func @transform_0(%arg0: i32) -> (i32, i32) {
    %c0_i32 = arith.constant 0 : i32
    %c0_i32_0 = arith.constant 0 : i32
    return %c0_i32, %arg0 : i32, i32
  }
  func.func @transform_1(%arg0: i32) -> (i32, i32) {
    %c0_i32 = arith.constant 0 : i32
    %c0_i32_0 = arith.constant 0 : i32
    %c0_i32_1 = arith.constant 0 : i32
    return %c0_i32, %c0_i32_0 : i32, i32
  }
  func.func @transform_2(%arg0: i32) -> (i32, i32) {
    %c0_i32 = arith.constant 0 : i32
    %c0_i32_0 = arith.constant 0 : i32
    %c0_i32_1 = arith.constant 0 : i32
    return %c0_i32, %c0_i32_0 : i32, i32
  }
  func.func @transform_3(%arg0: i32) -> (i32, i32) {
    %c0_i32 = arith.constant 0 : i32
    %c0_i32_0 = arith.constant 0 : i32
    %c0_i32_1 = arith.constant 0 : i32
    return %c0_i32, %c0_i32_0 : i32, i32
  }
  func.func @transform_4(%arg0: i32) -> (i32, i32) {
    %c0_i32 = arith.constant 0 : i32
    %c0_i32_0 = arith.constant 0 : i32
    %c0_i32_1 = arith.constant 0 : i32
    return %c0_i32, %c0_i32_0 : i32, i32
  }
  func.func @transform_5(%arg0: i32) -> (i32, i32) {
    %c0_i32 = arith.constant 0 : i32
    %c0_i32_0 = arith.constant 0 : i32
    %c0_i32_1 = arith.constant 0 : i32
    return %c0_i32, %c0_i32_0 : i32, i32
  }
  func.func @transform_6(%arg0: i32) -> (i32, i32) {
    %c0_i32 = arith.constant 0 : i32
    %c0_i32_0 = arith.constant 0 : i32
    %c0_i32_1 = arith.constant 0 : i32
    return %c0_i32, %c0_i32_0 : i32, i32
  }
  func.func @transform_7(%arg0: i32) -> (i32, i32) {
    %c0_i32 = arith.constant 0 : i32
    %c0_i32_0 = arith.constant 0 : i32
    return %c0_i32, %arg0 : i32, i32
  }
}

</mosaic_0001>

<llo_original>
// kernel: _lambda_.1
$region0: #{_lambda_.1}
  #allocation0 [shape = 'u32[]', space=smem, size = 0x4, offset = 0x4, fixed_abs, tag = 'smem constant byte address 0x4 - core index']
  #allocation1 [shape = 'u32[144,128]{1,0:T(1,128)}', space=vmem, size = 0x12000, scoped, tag = 'internal scratch']
  %s0 = inlined_call_operand.vmem [shape: bf16[16,8], index: 0, kind: input, shape index: {}]
  %s1 = inlined_call_operand.hbm [shape: bf16[128,16], index: 1, kind: input, shape index: {}]
  %s2 = inlined_call_operand.hbm [shape: f32[128,1], index: 2, kind: input, shape index: {}]
  %s3 = inlined_call_operand.hbm [shape: bf16[128,128], index: 3, kind: input, shape index: {}]
  %s4 = inlined_call_operand.hbm [shape: f32[128,1], index: 4, kind: input, shape index: {}]
  %s5 = inlined_call_operand.vmem [shape: bf16[8,128], index: 5, kind: input, shape index: {}]
  %s6 = inlined_call_operand.vmem [shape: f32[8,1], index: 6, kind: input, shape index: {}]
  %s7 = inlined_call_operand.vmem [shape: f32[8,8], index: 7, kind: output, shape index: {}]
  %s8 = sld [smem:[#allocation0]]
  $region54: #{_lambda_.1} parent=0
    _
  %s10 = ssub.s32 1, %s8
  %s11 = scalar_select 0, %s10, %s8
  $region1: #{_lambda_.1} parent=0
    #allocation2 [shape = 'u8[32768]{0}', space=vmem, size = 0x8000, scoped, tag = 'input window, operand 1, single buffered']
    #allocation3 [shape = 's32[1]{0}', space=sflag, size = 0x4, scoped, tag = 'scoped memory for _lambda_.1']
    #allocation4 [shape = 'u8[65536]{0}', space=vmem, size = 0x10000, scoped, tag = 'input window, operand 2, single buffered']
    #allocation5 [shape = 's32[1]{0}', space=sflag, size = 0x4, scoped, tag = 'scoped memory for _lambda_.1']
    #allocation6 [shape = 'u8[32768]{0}', space=vmem, size = 0x8000, scoped, tag = 'input window, operand 3, single buffered']
    #allocation7 [shape = 'u8[65536]{0}', space=vmem, size = 0x10000, scoped, tag = 'input window, operand 4, single buffered']
    #allocation8 [shape = 's32[1]{0}', space=sflag, size = 0x4, scoped, tag = 'scoped memory for _lambda_.1']
    %12 = vsyncpa [#allocation3], 0
    %13 = vsyncpa [#allocation5], 0
    %14 = vsyncpa [#allocation8], 0
    // Predicated region
    $region2: #{_lambda_.1} parent=1 // pred_check
      _
    $region3: #{_lambda_.1} parent=1 // pred_check_branch
      %16 = sbr.rel (0) target = $region5
    $region4: #{_lambda_.1} parent=1 // pred_region
      _
    $region5: #{_lambda_.1} parent=1 // pred_fallthru
      _
    // Predicated region
    $region6: #{_lambda_.1} parent=1 // pred_check
      _
    $region7: #{_lambda_.1} parent=1 // pred_check_branch
      %18 = sbr.rel (0) target = $region9
    $region8: #{_lambda_.1} parent=1 // pred_region
      %s20 = ssub.s32 1024, 1024
      %21 = vsyncadd [#allocation3], %s20
      %s22 = sshll.u32 [#allocation2], 4
      %s23 = int_to_ptr.vmem [resolvable:$true] %s22
      %28 = dma.hbm_to_vmem [thread:$0]  %s1, 1024, %s23, [#allocation3], 64, 64, 4
    $region9: #{_lambda_.1} parent=1 // pred_fallthru
      _
    // Predicated region
    $region10: #{_lambda_.1} parent=1 // pred_check
      _
    $region11: #{_lambda_.1} parent=1 // pred_check_branch
      %30 = sbr.rel (0) target = $region13
    $region12: #{_lambda_.1} parent=1 // pred_region
      %s32 = ssub.s32 2048, 2048
      %33 = vsyncadd [#allocation5], %s32
      %s34 = sshll.u32 [#allocation4], 4
      %s35 = int_to_ptr.vmem [resolvable:$true] %s34
      %40 = dma.hbm_to_vmem [thread:$0]  %s2, 2048, %s35, [#allocation5], 128, 128, 8
    $region13: #{_lambda_.1} parent=1 // pred_fallthru
      _
    // Predicated region
    $region14: #{_lambda_.1} parent=1 // pred_check
      _
    $region15: #{_lambda_.1} parent=1 // pred_check_branch
      %42 = sbr.rel (0) target = $region17
    $region16: #{_lambda_.1} parent=1 // pred_region
      %s44 = ssub.s32 1024, 1024
      %45 = vsyncadd [#allocation5], %s44
      %s46 = sshll.u32 [#allocation6], 4
      %s47 = int_to_ptr.vmem [resolvable:$true] %s46
      %52 = dma.hbm_to_vmem [thread:$0]  %s3, 1024, %s47, [#allocation5], 64, 64, 4
    $region17: #{_lambda_.1} parent=1 // pred_fallthru
      _
    // Predicated region
    $region18: #{_lambda_.1} parent=1 // pred_check
      _
    $region19: #{_lambda_.1} parent=1 // pred_check_branch
      %54 = sbr.rel (0) target = $region21
    $region20: #{_lambda_.1} parent=1 // pred_region
      %s56 = ssub.s32 2048, 2048
      %57 = vsyncadd [#allocation8], %s56
      %s58 = sshll.u32 [#allocation7], 4
      %s59 = int_to_ptr.vmem [resolvable:$true] %s58
      %64 = dma.hbm_to_vmem [thread:$0]  %s4, 2048, %s59, [#allocation8], 128, 128, 8
    $region21: #{_lambda_.1} parent=1 // pred_fallthru
      _
    // Predicated region
    $region22: #{_lambda_.1} parent=1 // pred_check
      _
    $region23: #{_lambda_.1} parent=1 // pred_check_branch
      %66 = sbr.rel (0) target = $region25
    $region24: #{_lambda_.1} parent=1 // pred_region
      _
    $region25: #{_lambda_.1} parent=1 // pred_fallthru
      _
    // Predicated region
    $region26: #{_lambda_.1} parent=1 // pred_check
      _
    $region27: #{_lambda_.1} parent=1 // pred_check_branch
      %68 = sbr.rel (0) target = $region29
    $region28: #{_lambda_.1} parent=1 // pred_region
      _
    $region29: #{_lambda_.1} parent=1 // pred_fallthru
      _
    // Predicated region
    $region30: #{_lambda_.1} parent=1 // pred_check
      _
    $region31: #{_lambda_.1} parent=1 // pred_check_branch
      %70 = sbr.rel (0) target = $region33
    $region32: #{_lambda_.1} parent=1 // pred_region
      %71 = dma.done [#allocation3], 1024
    $region33: #{_lambda_.1} parent=1 // pred_fallthru
      _
    // Predicated region
    $region34: #{_lambda_.1} parent=1 // pred_check
      _
    $region35: #{_lambda_.1} parent=1 // pred_check_branch
      %73 = sbr.rel (0) target = $region37
    $region36: #{_lambda_.1} parent=1 // pred_region
      %74 = dma.done [#allocation5], 2048
    $region37: #{_lambda_.1} parent=1 // pred_fallthru
      _
    // Predicated region
    $region38: #{_lambda_.1} parent=1 // pred_check
      _
    $region39: #{_lambda_.1} parent=1 // pred_check_branch
      %76 = sbr.rel (0) target = $region41
    $region40: #{_lambda_.1} parent=1 // pred_region
      %77 = dma.done [#allocation5], 1024
    $region41: #{_lambda_.1} parent=1 // pred_fallthru
      _
    // Predicated region
    $region42: #{_lambda_.1} parent=1 // pred_check
      _
    $region43: #{_lambda_.1} parent=1 // pred_check_branch
      %79 = sbr.rel (0) target = $region45
    $region44: #{_lambda_.1} parent=1 // pred_region
      %80 = dma.done [#allocation8], 2048
    $region45: #{_lambda_.1} parent=1 // pred_fallthru
      _
    %v82 = vld [vmem:[%s0] sm:$0xf]
    %v83 = vld [vmem:[%s0 + $0x4] sm:$0xf]
    %v84 = vld [vmem:[#allocation2] sm:$0xf]
    %v85 = vld [vmem:[#allocation2 + $0x4] sm:$0xf]
    %v86 = vld [vmem:[#allocation2 + $0x8] sm:$0xf]
    %v87 = vld [vmem:[#allocation2 + $0xc] sm:$0xf]
    %v88 = vld [vmem:[#allocation2 + $0x10] sm:$0xf]
    %v89 = vld [vmem:[#allocation2 + $0x14] sm:$0xf]
    %v90 = vld [vmem:[#allocation2 + $0x18] sm:$0xf]
    %v91 = vld [vmem:[#allocation2 + $0x1c] sm:$0xf]
    %v92 = vld [vmem:[#allocation2 + $0x20] sm:$0xf]
    %v93 = vld [vmem:[#allocation2 + $0x24] sm:$0xf]
    %v94 = vld [vmem:[#allocation2 + $0x28] sm:$0xf]
    %v95 = vld [vmem:[#allocation2 + $0x2c] sm:$0xf]
    %v96 = vld [vmem:[#allocation2 + $0x30] sm:$0xf]
    %v97 = vld [vmem:[#allocation2 + $0x34] sm:$0xf]
    %v98 = vld [vmem:[#allocation2 + $0x38] sm:$0xf]
    %v99 = vld [vmem:[#allocation2 + $0x3c] sm:$0xf]
    %v100 = vld [vmem:[#allocation4] sm:$0xff]
    %v101 = vld [vmem:[#allocation4 + $0x8] sm:$0xff]
    %v102 = vld [vmem:[#allocation4 + $0x10] sm:$0xff]
    %v103 = vld [vmem:[#allocation4 + $0x18] sm:$0xff]
    %v104 = vld [vmem:[#allocation4 + $0x20] sm:$0xff]
    %v105 = vld [vmem:[#allocation4 + $0x28] sm:$0xff]
    %v106 = vld [vmem:[#allocation4 + $0x30] sm:$0xff]
    %v107 = vld [vmem:[#allocation4 + $0x38] sm:$0xff]
    %v108 = vld [vmem:[#allocation4 + $0x40] sm:$0xff]
    %v109 = vld [vmem:[#allocation4 + $0x48] sm:$0xff]
    %v110 = vld [vmem:[#allocation4 + $0x50] sm:$0xff]
    %v111 = vld [vmem:[#allocation4 + $0x58] sm:$0xff]
    %v112 = vld [vmem:[#allocation4 + $0x60] sm:$0xff]
    %v113 = vld [vmem:[#allocation4 + $0x68] sm:$0xff]
    %v114 = vld [vmem:[#allocation4 + $0x70] sm:$0xff]
    %v115 = vld [vmem:[#allocation4 + $0x78] sm:$0xff]
    %117 = vset.pattern.permute.xlu0 0
    %118 = vperm.xlu0 %117, %v100
    %v119 = vpop.permute.xlu0 %118
    %122 = vset.pattern.permute.xlu0 0
    %123 = vperm.xlu0 %122, %v101
    %v124 = vpop.permute.xlu0 %123
    %127 = vset.pattern.permute.xlu0 0
    %128 = vperm.xlu0 %127, %v102
    %v129 = vpop.permute.xlu0 %128
    %132 = vset.pattern.permute.xlu0 0
    %133 = vperm.xlu0 %132, %v103
    %v134 = vpop.permute.xlu0 %133
    %137 = vset.pattern.permute.xlu0 0
    %138 = vperm.xlu0 %137, %v104
    %v139 = vpop.permute.xlu0 %138
    %142 = vset.pattern.permute.xlu0 0
    %143 = vperm.xlu0 %142, %v105
    %v144 = vpop.permute.xlu0 %143
    %147 = vset.pattern.permute.xlu0 0
    %148 = vperm.xlu0 %147, %v106
    %v149 = vpop.permute.xlu0 %148
    %152 = vset.pattern.permute.xlu0 0
    %153 = vperm.xlu0 %152, %v107
    %v154 = vpop.permute.xlu0 %153
    %157 = vset.pattern.permute.xlu0 0
    %158 = vperm.xlu0 %157, %v108
    %v159 = vpop.permute.xlu0 %158
    %162 = vset.pattern.permute.xlu0 0
    %163 = vperm.xlu0 %162, %v109
    %v164 = vpop.permute.xlu0 %163
    %167 = vset.pattern.permute.xlu0 0
    %168 = vperm.xlu0 %167, %v110
    %v169 = vpop.permute.xlu0 %168
    %172 = vset.pattern.permute.xlu0 0
    %173 = vperm.xlu0 %172, %v111
    %v174 = vpop.permute.xlu0 %173
    %177 = vset.pattern.permute.xlu0 0
    %178 = vperm.xlu0 %177, %v112
    %v179 = vpop.permute.xlu0 %178
    %182 = vset.pattern.permute.xlu0 0
    %183 = vperm.xlu0 %182, %v113
    %v184 = vpop.permute.xlu0 %183
    %187 = vset.pattern.permute.xlu0 0
    %188 = vperm.xlu0 %187, %v114
    %v189 = vpop.permute.xlu0 %188
    %192 = vset.pattern.permute.xlu0 0
    %193 = vperm.xlu0 %192, %v115
    %v194 = vpop.permute.xlu0 %193
    %v212 = vunpack.c.l.b16 %v84
    %v213 = vunpack.c.l.b16 %v85
    %v214 = vunpack.c.l.b16 %v86
    %v215 = vunpack.c.l.b16 %v87
    %v216 = vunpack.c.l.b16 %v88
    %v217 = vunpack.c.l.b16 %v89
    %v218 = vunpack.c.l.b16 %v90
    %v219 = vunpack.c.l.b16 %v91
    %v220 = vunpack.c.l.b16 %v92
    %v221 = vunpack.c.l.b16 %v93
    %v222 = vunpack.c.l.b16 %v94
    %v223 = vunpack.c.l.b16 %v95
    %v224 = vunpack.c.l.b16 %v96
    %v225 = vunpack.c.l.b16 %v97
    %v226 = vunpack.c.l.b16 %v98
    %v227 = vunpack.c.l.b16 %v99
    %v228 = vpack.c.b16 %v213, %v212
    %v229 = vpack.c.b16 %v215, %v214
    %v230 = vpack.c.b16 %v217, %v216
    %v231 = vpack.c.b16 %v219, %v218
    %v232 = vpack.c.b16 %v221, %v220
    %v233 = vpack.c.b16 %v223, %v222
    %v234 = vpack.c.b16 %v225, %v224
    %v235 = vpack.c.b16 %v227, %v226
    %v238 = vunpack.c.l.b16 %v82
    %v239 = vunpack.c.l.b16 %v83
    %v240 = vpack.c.b16 %v239, %v238
    %vm242 = vcmask 130048
    %v244 = vsel %vm242, %v228, 0
    %v247 = vsel %vm242, %v229, 0
    %v250 = vsel %vm242, %v230, 0
    %v253 = vsel %vm242, %v231, 0
    %v256 = vsel %vm242, %v232, 0
    %v259 = vsel %vm242, %v233, 0
    %v262 = vsel %vm242, %v234, 0
    %v265 = vsel %vm242, %v235, 0
    %267 = vmatprep.subr.bf16.mxu0 0
    %268 = vmatpush1.bf16.msra.mxu0 0
    %269 = vmatprep.subr.bf16.mxu0 0
    %270 = vmatpush1.bf16.msra.mxu0 0
    %271 = vmatprep.subr.bf16.mxu0 0
    %272 = vmatpush1.bf16.msra.mxu0 0
    %273 = vmatprep.subr.bf16.mxu0 0
    %274 = vmatpush1.bf16.msra.mxu0 0
    %275 = vmatprep.subr.bf16.mxu0 0
    %276 = vmatpush1.bf16.msra.mxu0 0
    %277 = vmatprep.subr.bf16.mxu0 0
    %278 = vmatpush1.bf16.msra.mxu0 0
    %279 = vmatprep.subr.bf16.mxu0 0
    %280 = vmatpush1.bf16.msra.mxu0 0
    %281 = vmatprep.subr.bf16.mxu0 0
    %282 = vmatpush1.bf16.msra.mxu0 %v240
    %283 = vmatprep.subr.bf16.mxu0 0
    %284 = vmatpush2.bf16.msra.mxu0 0
    %285 = vmatprep.subr.bf16.mxu0 0
    %286 = vmatpush2.bf16.msra.mxu0 0
    %287 = vmatprep.subr.bf16.mxu0 0
    %288 = vmatpush2.bf16.msra.mxu0 0
    %289 = vmatprep.subr.bf16.mxu0 0
    %290 = vmatpush2.bf16.msra.mxu0 0
    %291 = vmatprep.subr.bf16.mxu0 0
    %292 = vmatpush2.bf16.msra.mxu0 0
    %293 = vmatprep.subr.bf16.mxu0 0
    %294 = vmatpush2.bf16.msra.mxu0 0
    %295 = vmatprep.subr.bf16.mxu0 0
    %296 = vmatpush2.bf16.msra.mxu0 0
    %297 = vmatprep.subr.bf16.mxu0 0
    %298 = vmatpush2.bf16.msra.mxu0 0
    %299 = vmatprep.mubr.bf16.mxu0 0
    %300 = vmatmul.mubr.bf16.gmra.mxu0 %v244
    %v301 = vpop.f32.mrf.mxu0
    %v302 = vadd.f32 %v119, %v301
    %v303 = vpop.f32.mrf.mxu0
    %v304 = vpop.f32.mrf.mxu0
    %v305 = vadd.f32 %v124, %v304
    %v306 = vpop.f32.mrf.mxu0
    %307 = vmatprep.mubr.bf16.mxu0 0
    %308 = vmatmul.mubr.bf16.gmra.mxu0 %v247
    %v309 = vpop.f32.mrf.mxu0
    %v310 = vadd.f32 %v129, %v309
    %v311 = vpop.f32.mrf.mxu0
    %v312 = vpop.f32.mrf.mxu0
    %v313 = vadd.f32 %v134, %v312
    %v314 = vpop.f32.mrf.mxu0
    %315 = vmatprep.mubr.bf16.mxu0 0
    %316 = vmatmul.mubr.bf16.gmra.mxu0 %v250
    %v317 = vpop.f32.mrf.mxu0
    %v318 = vadd.f32 %v139, %v317
    %v319 = vpop.f32.mrf.mxu0
    %v320 = vpop.f32.mrf.mxu0
    %v321 = vadd.f32 %v144, %v320
    %v322 = vpop.f32.mrf.mxu0
    %323 = vmatprep.mubr.bf16.mxu0 0
    %324 = vmatmul.mubr.bf16.gmra.mxu0 %v253
    %v325 = vpop.f32.mrf.mxu0
    %v326 = vadd.f32 %v149, %v325
    %v327 = vpop.f32.mrf.mxu0
    %v328 = vpop.f32.mrf.mxu0
    %v329 = vadd.f32 %v154, %v328
    %v330 = vpop.f32.mrf.mxu0
    %331 = vmatprep.mubr.bf16.mxu0 0
    %332 = vmatmul.mubr.bf16.gmra.mxu0 %v256
    %v333 = vpop.f32.mrf.mxu0
    %v334 = vadd.f32 %v159, %v333
    %v335 = vpop.f32.mrf.mxu0
    %v336 = vpop.f32.mrf.mxu0
    %v337 = vadd.f32 %v164, %v336
    %v338 = vpop.f32.mrf.mxu0
    %339 = vmatprep.mubr.bf16.mxu0 0
    %340 = vmatmul.mubr.bf16.gmra.mxu0 %v259
    %v341 = vpop.f32.mrf.mxu0
    %v342 = vadd.f32 %v169, %v341
    %v343 = vpop.f32.mrf.mxu0
    %v344 = vpop.f32.mrf.mxu0
    %v345 = vadd.f32 %v174, %v344
    %v346 = vpop.f32.mrf.mxu0
    %347 = vmatprep.mubr.bf16.mxu0 0
    %348 = vmatmul.mubr.bf16.gmra.mxu0 %v262
    %v349 = vpop.f32.mrf.mxu0
    %v350 = vadd.f32 %v179, %v349
    %v351 = vpop.f32.mrf.mxu0
    %v352 = vpop.f32.mrf.mxu0
    %v353 = vadd.f32 %v184, %v352
    %v354 = vpop.f32.mrf.mxu0
    %355 = vmatprep.mubr.bf16.mxu0 0
    %356 = vmatmul.mubr.bf16.gmra.mxu0 %v265
    %v357 = vpop.f32.mrf.mxu0
    %v358 = vadd.f32 %v189, %v357
    %v359 = vpop.f32.mrf.mxu0
    %v360 = vpop.f32.mrf.mxu0
    %v361 = vadd.f32 %v194, %v360
    %v362 = vpop.f32.mrf.mxu0
    %363 = vdwg.mxu0
    %v364 = vtanh.pop %v302
    %v365 = vtanh.pop %v305
    %v366 = vtanh.pop %v310
    %v367 = vtanh.pop %v313
    %v368 = vtanh.pop %v318
    %v369 = vtanh.pop %v321
    %v370 = vtanh.pop %v326
    %v371 = vtanh.pop %v329
    %v372 = vtanh.pop %v334
    %v373 = vtanh.pop %v337
    %v374 = vtanh.pop %v342
    %v375 = vtanh.pop %v345
    %v376 = vtanh.pop %v350
    %v377 = vtanh.pop %v353
    %v378 = vtanh.pop %v358
    %v379 = vtanh.pop %v361
    %v380 = vld [vmem:[#allocation6] sm:$0xf]
    %v381 = vld [vmem:[#allocation6 + $0x4] sm:$0xf]
    %v382 = vld [vmem:[#allocation6 + $0x8] sm:$0xf]
    %v383 = vld [vmem:[#allocation6 + $0xc] sm:$0xf]
    %v384 = vld [vmem:[#allocation6 + $0x10] sm:$0xf]
    %v385 = vld [vmem:[#allocation6 + $0x14] sm:$0xf]
    %v386 = vld [vmem:[#allocation6 + $0x18] sm:$0xf]
    %v387 = vld [vmem:[#allocation6 + $0x1c] sm:$0xf]
    %v388 = vld [vmem:[#allocation6 + $0x20] sm:$0xf]
    %v389 = vld [vmem:[#allocation6 + $0x24] sm:$0xf]
    %v390 = vld [vmem:[#allocation6 + $0x28] sm:$0xf]
    %v391 = vld [vmem:[#allocation6 + $0x2c] sm:$0xf]
    %v392 = vld [vmem:[#allocation6 + $0x30] sm:$0xf]
    %v393 = vld [vmem:[#allocation6 + $0x34] sm:$0xf]
    %v394 = vld [vmem:[#allocation6 + $0x38] sm:$0xf]
    %v395 = vld [vmem:[#allocation6 + $0x3c] sm:$0xf]
    %v396 = vpack.c.bf16 %v365, %v364
    %v397 = vpack.c.bf16 %v367, %v366
    %v398 = vpack.c.bf16 %v369, %v368
    %v399 = vpack.c.bf16 %v371, %v370
    %v400 = vpack.c.bf16 %v373, %v372
    %v401 = vpack.c.bf16 %v375, %v374
    %v402 = vpack.c.bf16 %v377, %v376
    %v403 = vpack.c.bf16 %v379, %v378
    %v404 = vld [vmem:[#allocation7] sm:$0xff]
    %v405 = vld [vmem:[#allocation7 + $0x8] sm:$0xff]
    %v406 = vld [vmem:[#allocation7 + $0x10] sm:$0xff]
    %v407 = vld [vmem:[#allocation7 + $0x18] sm:$0xff]
    %v408 = vld [vmem:[#allocation7 + $0x20] sm:$0xff]
    %v409 = vld [vmem:[#allocation7 + $0x28] sm:$0xff]
    %v410 = vld [vmem:[#allocation7 + $0x30] sm:$0xff]
    %v411 = vld [vmem:[#allocation7 + $0x38] sm:$0xff]
    %v412 = vld [vmem:[#allocation7 + $0x40] sm:$0xff]
    %v413 = vld [vmem:[#allocation7 + $0x48] sm:$0xff]
    %v414 = vld [vmem:[#allocation7 + $0x50] sm:$0xff]
    %v415 = vld [vmem:[#allocation7 + $0x58] sm:$0xff]
    %v416 = vld [vmem:[#allocation7 + $0x60] sm:$0xff]
    %v417 = vld [vmem:[#allocation7 + $0x68] sm:$0xff]
    %v418 = vld [vmem:[#allocation7 + $0x70] sm:$0xff]
    %v419 = vld [vmem:[#allocation7 + $0x78] sm:$0xff]
    %421 = vset.pattern.permute.xlu0 0
    %422 = vperm.xlu0 %421, %v404
    %v423 = vpop.permute.xlu0 %422
    %426 = vset.pattern.permute.xlu0 0
    %427 = vperm.xlu0 %426, %v405
    %v428 = vpop.permute.xlu0 %427
    %431 = vset.pattern.permute.xlu0 0
    %432 = vperm.xlu0 %431, %v406
    %v433 = vpop.permute.xlu0 %432
    %436 = vset.pattern.permute.xlu0 0
    %437 = vperm.xlu0 %436, %v407
    %v438 = vpop.permute.xlu0 %437
    %441 = vset.pattern.permute.xlu0 0
    %442 = vperm.xlu0 %441, %v408
    %v443 = vpop.permute.xlu0 %442
    %446 = vset.pattern.permute.xlu0 0
    %447 = vperm.xlu0 %446, %v409
    %v448 = vpop.permute.xlu0 %447
    %451 = vset.pattern.permute.xlu0 0
    %452 = vperm.xlu0 %451, %v410
    %v453 = vpop.permute.xlu0 %452
    %456 = vset.pattern.permute.xlu0 0
    %457 = vperm.xlu0 %456, %v411
    %v458 = vpop.permute.xlu0 %457
    %461 = vset.pattern.permute.xlu0 0
    %462 = vperm.xlu0 %461, %v412
    %v463 = vpop.permute.xlu0 %462
    %466 = vset.pattern.permute.xlu0 0
    %467 = vperm.xlu0 %466, %v413
    %v468 = vpop.permute.xlu0 %467
    %471 = vset.pattern.permute.xlu0 0
    %472 = vperm.xlu0 %471, %v414
    %v473 = vpop.permute.xlu0 %472
    %476 = vset.pattern.permute.xlu0 0
    %477 = vperm.xlu0 %476, %v415
    %v478 = vpop.permute.xlu0 %477
    %481 = vset.pattern.permute.xlu0 0
    %482 = vperm.xlu0 %481, %v416
    %v483 = vpop.permute.xlu0 %482
    %486 = vset.pattern.permute.xlu0 0
    %487 = vperm.xlu0 %486, %v417
    %v488 = vpop.permute.xlu0 %487
    %491 = vset.pattern.permute.xlu0 0
    %492 = vperm.xlu0 %491, %v418
    %v493 = vpop.permute.xlu0 %492
    %496 = vset.pattern.permute.xlu0 0
    %497 = vperm.xlu0 %496, %v419
    %v498 = vpop.permute.xlu0 %497
    %v516 = vunpack.c.l.b16 %v380
    %v517 = vunpack.c.l.b16 %v381
    %v518 = vunpack.c.l.b16 %v382
    %v519 = vunpack.c.l.b16 %v383
    %v520 = vunpack.c.l.b16 %v384
    %v521 = vunpack.c.l.b16 %v385
    %v522 = vunpack.c.l.b16 %v386
    %v523 = vunpack.c.l.b16 %v387
    %v524 = vunpack.c.l.b16 %v388
    %v525 = vunpack.c.l.b16 %v389
    %v526 = vunpack.c.l.b16 %v390
    %v527 = vunpack.c.l.b16 %v391
    %v528 = vunpack.c.l.b16 %v392
    %v529 = vunpack.c.l.b16 %v393
    %v530 = vunpack.c.l.b16 %v394
    %v531 = vunpack.c.l.b16 %v395
    %v532 = vpack.c.b16 %v517, %v516
    %v533 = vpack.c.b16 %v519, %v518
    %v534 = vpack.c.b16 %v521, %v520
    %v535 = vpack.c.b16 %v523, %v522
    %v536 = vpack.c.b16 %v525, %v524
    %v537 = vpack.c.b16 %v527, %v526
    %v538 = vpack.c.b16 %v529, %v528
    %v539 = vpack.c.b16 %v531, %v530
    %548 = vmatprep.subr.bf16.mxu0 0
    %549 = vmatpush1.bf16.msra.mxu0 %v403
    %550 = vmatprep.subr.bf16.mxu0 0
    %551 = vmatpush1.bf16.msra.mxu0 %v402
    %552 = vmatprep.subr.bf16.mxu0 0
    %553 = vmatpush1.bf16.msra.mxu0 %v401
    %554 = vmatprep.subr.bf16.mxu0 0
    %555 = vmatpush1.bf16.msra.mxu0 %v400
    %556 = vmatprep.subr.bf16.mxu0 0
    %557 = vmatpush1.bf16.msra.mxu0 %v399
    %558 = vmatprep.subr.bf16.mxu0 0
    %559 = vmatpush1.bf16.msra.mxu0 %v398
    %560 = vmatprep.subr.bf16.mxu0 0
    %561 = vmatpush1.bf16.msra.mxu0 %v397
    %562 = vmatprep.subr.bf16.mxu0 0
    %563 = vmatpush1.bf16.msra.mxu0 %v396
    %564 = vmatprep.subr.bf16.mxu0 0
    %565 = vmatpush2.bf16.msra.mxu0 0
    %566 = vmatprep.subr.bf16.mxu0 0
    %567 = vmatpush2.bf16.msra.mxu0 0
    %568 = vmatprep.subr.bf16.mxu0 0
    %569 = vmatpush2.bf16.msra.mxu0 0
    %570 = vmatprep.subr.bf16.mxu0 0
    %571 = vmatpush2.bf16.msra.mxu0 0
    %572 = vmatprep.subr.bf16.mxu0 0
    %573 = vmatpush2.bf16.msra.mxu0 0
    %574 = vmatprep.subr.bf16.mxu0 0
    %575 = vmatpush2.bf16.msra.mxu0 0
    %576 = vmatprep.subr.bf16.mxu0 0
    %577 = vmatpush2.bf16.msra.mxu0 0
    %578 = vmatprep.subr.bf16.mxu0 0
    %579 = vmatpush2.bf16.msra.mxu0 0
    %580 = vmatprep.mubr.bf16.mxu0 0
    %581 = vmatmul.mubr.bf16.gmra.mxu0 %v532
    %v582 = vpop.f32.mrf.mxu0
    %v583 = vadd.f32 %v423, %v582
    %v584 = vpop.f32.mrf.mxu0
    %v585 = vpop.f32.mrf.mxu0
    %v586 = vadd.f32 %v428, %v585
    %v587 = vpop.f32.mrf.mxu0
    %588 = vmatprep.mubr.bf16.mxu0 0
    %589 = vmatmul.mubr.bf16.gmra.mxu0 %v533
    %v590 = vpop.f32.mrf.mxu0
    %v591 = vadd.f32 %v433, %v590
    %v592 = vpop.f32.mrf.mxu0
    %v593 = vpop.f32.mrf.mxu0
    %v594 = vadd.f32 %v438, %v593
    %v595 = vpop.f32.mrf.mxu0
    %596 = vmatprep.mubr.bf16.mxu0 0
    %597 = vmatmul.mubr.bf16.gmra.mxu0 %v534
    %v598 = vpop.f32.mrf.mxu0
    %v599 = vadd.f32 %v443, %v598
    %v600 = vpop.f32.mrf.mxu0
    %v601 = vpop.f32.mrf.mxu0
    %v602 = vadd.f32 %v448, %v601
    %v603 = vpop.f32.mrf.mxu0
    %604 = vmatprep.mubr.bf16.mxu0 0
    %605 = vmatmul.mubr.bf16.gmra.mxu0 %v535
    %v606 = vpop.f32.mrf.mxu0
    %v607 = vadd.f32 %v453, %v606
    %v608 = vpop.f32.mrf.mxu0
    %v609 = vpop.f32.mrf.mxu0
    %v610 = vadd.f32 %v458, %v609
    %v611 = vpop.f32.mrf.mxu0
    %612 = vmatprep.mubr.bf16.mxu0 0
    %613 = vmatmul.mubr.bf16.gmra.mxu0 %v536
    %v614 = vpop.f32.mrf.mxu0
    %v615 = vadd.f32 %v463, %v614
    %v616 = vpop.f32.mrf.mxu0
    %v617 = vpop.f32.mrf.mxu0
    %v618 = vadd.f32 %v468, %v617
    %v619 = vpop.f32.mrf.mxu0
    %620 = vmatprep.mubr.bf16.mxu0 0
    %621 = vmatmul.mubr.bf16.gmra.mxu0 %v537
    %v622 = vpop.f32.mrf.mxu0
    %v623 = vadd.f32 %v473, %v622
    %v624 = vpop.f32.mrf.mxu0
    %v625 = vpop.f32.mrf.mxu0
    %v626 = vadd.f32 %v478, %v625
    %v627 = vpop.f32.mrf.mxu0
    %628 = vmatprep.mubr.bf16.mxu0 0
    %629 = vmatmul.mubr.bf16.gmra.mxu0 %v538
    %v630 = vpop.f32.mrf.mxu0
    %v631 = vadd.f32 %v483, %v630
    %v632 = vpop.f32.mrf.mxu0
    %v633 = vpop.f32.mrf.mxu0
    %v634 = vadd.f32 %v488, %v633
    %v635 = vpop.f32.mrf.mxu0
    %636 = vmatprep.mubr.bf16.mxu0 0
    %637 = vmatmul.mubr.bf16.gmra.mxu0 %v539
    %v638 = vpop.f32.mrf.mxu0
    %v639 = vadd.f32 %v493, %v638
    %v640 = vpop.f32.mrf.mxu0
    %v641 = vpop.f32.mrf.mxu0
    %v642 = vadd.f32 %v498, %v641
    %v643 = vpop.f32.mrf.mxu0
    %644 = vdwg.mxu0
    %v645 = vtanh.pop %v583
    %v646 = vtanh.pop %v586
    %v647 = vtanh.pop %v591
    %v648 = vtanh.pop %v594
    %v649 = vtanh.pop %v599
    %v650 = vtanh.pop %v602
    %v651 = vtanh.pop %v607
    %v652 = vtanh.pop %v610
    %v653 = vtanh.pop %v615
    %v654 = vtanh.pop %v618
    %v655 = vtanh.pop %v623
    %v656 = vtanh.pop %v626
    %v657 = vtanh.pop %v631
    %v658 = vtanh.pop %v634
    %v659 = vtanh.pop %v639
    %v660 = vtanh.pop %v642
    %v661 = vld [vmem:[%s5] sm:$0xf]
    %v662 = vpack.c.bf16 %v646, %v645
    %v663 = vpack.c.bf16 %v648, %v647
    %v664 = vpack.c.bf16 %v650, %v649
    %v665 = vpack.c.bf16 %v652, %v651
    %v666 = vpack.c.bf16 %v654, %v653
    %v667 = vpack.c.bf16 %v656, %v655
    %v668 = vpack.c.bf16 %v658, %v657
    %v669 = vpack.c.bf16 %v660, %v659
    %v670 = vld [vmem:[%s6] sm:$0xff]
    %672 = vset.pattern.permute.xlu0 0
    %673 = vperm.xlu0 %672, %v670
    %v674 = vpop.permute.xlu0 %673
    %676 = vmatprep.subr.bf16.mxu0 0
    %677 = vmatpush1.bf16.msra.mxu0 %v669
    %678 = vmatprep.subr.bf16.mxu0 0
    %679 = vmatpush1.bf16.msra.mxu0 %v668
    %680 = vmatprep.subr.bf16.mxu0 0
    %681 = vmatpush1.bf16.msra.mxu0 %v667
    %682 = vmatprep.subr.bf16.mxu0 0
    %683 = vmatpush1.bf16.msra.mxu0 %v666
    %684 = vmatprep.subr.bf16.mxu0 0
    %685 = vmatpush1.bf16.msra.mxu0 %v665
    %686 = vmatprep.subr.bf16.mxu0 0
    %687 = vmatpush1.bf16.msra.mxu0 %v664
    %688 = vmatprep.subr.bf16.mxu0 0
    %689 = vmatpush1.bf16.msra.mxu0 %v663
    %690 = vmatprep.subr.bf16.mxu0 0
    %691 = vmatpush1.bf16.msra.mxu0 %v662
    %692 = vmatprep.subr.bf16.mxu0 0
    %693 = vmatpush2.bf16.msra.mxu0 0
    %694 = vmatprep.subr.bf16.mxu0 0
    %695 = vmatpush2.bf16.msra.mxu0 0
    %696 = vmatprep.subr.bf16.mxu0 0
    %697 = vmatpush2.bf16.msra.mxu0 0
    %698 = vmatprep.subr.bf16.mxu0 0
    %699 = vmatpush2.bf16.msra.mxu0 0
    %700 = vmatprep.subr.bf16.mxu0 0
    %701 = vmatpush2.bf16.msra.mxu0 0
    %702 = vmatprep.subr.bf16.mxu0 0
    %703 = vmatpush2.bf16.msra.mxu0 0
    %704 = vmatprep.subr.bf16.mxu0 0
    %705 = vmatpush2.bf16.msra.mxu0 0
    %706 = vmatprep.subr.bf16.mxu0 0
    %707 = vmatpush2.bf16.msra.mxu0 0
    %708 = vmatprep.mubr.bf16.mxu0 0
    %709 = vmatmul.mubr.bf16.gmra.mxu0 %v661
    %v710 = vpop.f32.mrf.mxu0
    %v711 = vadd.f32 %v674, %v710
    %v712 = vpop.f32.mrf.mxu0
    %v713 = vpop.f32.mrf.mxu0
    %v714 = vpop.f32.mrf.mxu0
    %715 = vdwg.mxu0
    %v716 = vmax.f32 %v711, 0.0
    %v717 = vadd.f32 %v716, 1.0
    %vm718 = vcmask 64512
    %719 = vst.msk [vmem:[%s7] sm:$0xff] %vm718, %v717
    // Predicated region
    $region46: #{_lambda_.1} parent=1 // pred_check
      _
    $region47: #{_lambda_.1} parent=1 // pred_check_branch
      %721 = sbr.rel (0) target = $region49
    $region48: #{_lambda_.1} parent=1 // pred_region
      _
    $region49: #{_lambda_.1} parent=1 // pred_fallthru
      _
    // Predicated region
    $region50: #{_lambda_.1} parent=1 // pred_check
      _
    $region51: #{_lambda_.1} parent=1 // pred_check_branch
      %723 = sbr.rel (0) target = $region53
    $region52: #{_lambda_.1} parent=1 // pred_region
      _
    $region53: #{_lambda_.1} parent=1 // pred_fallthru
      _
    %724 = vsyncpa [#allocation3], 1
    %725 = vsyncpa [#allocation5], 1
    %726 = vsyncpa [#allocation8], 1

</llo_original>
